<compile_context>
chip_gen: v7x
topology: tpu7x:2x2x1
jax: 0.10.0
libtpu: 0.0.40
codegen_flags: <defaults>
</compile_context>

<pallas_src>
import jax
import jax.numpy as jnp
from jax.experimental import pallas as pl
from jax.experimental.pallas import tpu as pltpu


def focus_kernel(x_ref, w_ref, bias_ref, pool_ref, o_ref):
    """One grid step = `g` complete 8-row pooling bands of one batch element.

    x_ref:    (g, C4, band_w)   bf16  space-to-depth activation, channel-major per band
    w_ref:    (c2, C4)          bf16  1x1 conv weight with BN scale folded in (resident)
    bias_ref: (c2, 1)           f32   folded BN shift (resident)
    pool_ref: (band_w, Pw_pad)  bf16  per-band AvgPool2d(8) matrix, 1/64 entries (resident)
    o_ref:    (g, c2, Pw_pad)   f32   pooled output, lane-dense (padded to 128 multiple)
    """
    g = x_ref.shape[0]
    for b in range(g):                               # static unroll over bands in this tile
        # 1x1 conv (+ folded BN scale) on the MXU: bf16 in, f32 accumulate.
        y = jnp.dot(w_ref[...], x_ref[b], preferred_element_type=jnp.float32)   # (c2, band_w)
        y = y + bias_ref[...]                        # folded BN shift
        y = y * jax.nn.sigmoid(y)                    # SiLU in f32 (EUP; f32 also keeps v5e happy)
        # Factorized AvgPool2d(8): the band holds exactly the 8 rows of every pooled cell, so a
        # single small (band_w, Pw_pad) matmul does the full 8x8 average for this band.
        pooled = jnp.dot(y.astype(jnp.bfloat16), pool_ref[...],
                         preferred_element_type=jnp.float32)                    # (c2, Pw_pad)
        o_ref[b] = pooled


def _pick_bands_per_step(Ph, N, band_bytes, max_block_bytes=12 << 20, max_unroll=32):
    """Largest divisor g of Ph such that the x block stays within the VMEM budget, the in-kernel
    unroll stays short, and the grid keeps >= 2 steps (v7x megacore)."""
    best = 1
    for g in range(1, Ph + 1):
        if Ph % g:
            continue
        if g > max_unroll:
            continue
        if g * band_bytes > max_block_bytes:
            continue
        if N * (Ph // g) < 2 and N * Ph >= 2:
            continue                                  # keep >=2 grid steps for the 2 TCs on v7x
        best = g
    return best


def focus_forward(x, conv_w, gamma, beta, running_mean, running_var,
                  eps=1e-3, pool_k=8):
    """x: (N, C, H, W) NCHW float32. conv_w: (c2, 4C, 1, 1). BN in inference (running stats)."""
    N, C, H, W = x.shape
    c2 = conv_w.shape[0]
    C4 = 4 * C
    assert conv_w.shape[1] == C4, "conv weight must have 4*C input channels"
    assert H % (2 * pool_k) == 0 and W % (2 * pool_k) == 0, \
        "Focus kernel requires H, W divisible by 2*pool_k (space-to-depth + AvgPool2d)"
    Hp, Wp = H // 2, W // 2
    HW = Hp * Wp
    Ph, Pw = Hp // pool_k, Wp // pool_k
    band_w = pool_k * Wp                              # lanes per pooling band (8 Hp-rows x Wp)
    Pw_pad = ((Pw + 127) // 128) * 128                # lane-dense pooled output per band

    # --- space-to-depth (exact PyTorch cat order) as ONE transpose pass writing bf16 once ---
    # h = 16*ph + 2*r + i, w = 2*wp + j ; target channel q = (2j+i)*C + c ; target lane = r*Wp + wp
    # TODO(synk): fuse this strided gather fully into the kernel (pl.ANY + manual strided DMA of
    #             raw NCHW x) to drop the remaining x_t HBM round trip.
    x7 = x.reshape(N, C, Ph, pool_k, 2, Wp, 2)
    x_t = jnp.transpose(x7, (0, 2, 6, 4, 1, 3, 5)).reshape(N, Ph, C4, band_w)
    x_t = x_t.astype(jnp.bfloat16)                    # (N, Ph, 4C, 8*Wp), band-major channel-major

    # --- fold BatchNorm (inference) into the conv weight + a per-channel bias ---
    inv_std = 1.0 / jnp.sqrt(running_var + eps)
    scale = gamma * inv_std                                                    # (c2,)
    w_scaled = (conv_w.reshape(c2, C4) * scale[:, None]).astype(jnp.bfloat16)  # (c2, 4C)
    bias = (beta - running_mean * scale).reshape(c2, 1).astype(jnp.float32)    # (c2, 1)

    # --- per-band AvgPool2d(8) matrix: (band_w, Pw_pad), entries 1/64 (exact in bf16) ---
    s = jnp.arange(band_w)
    pw_of_s = (s % Wp) // pool_k
    cols = jnp.arange(Pw_pad)
    pool_m = (pw_of_s[:, None] == cols[None, :]).astype(jnp.float32) / float(pool_k * pool_k)
    pool_m = pool_m.astype(jnp.bfloat16)

    # --- bands per grid step: sized for v7x's 64 MiB VMEM (double-buffered x block <= ~24 MiB) ---
    band_bytes = C4 * band_w * 2                      # bf16 activation bytes per band
    g = _pick_bands_per_step(Ph, N, band_bytes)
    n_tiles = Ph // g

    cost = pl.CostEstimate(
        flops=2 * N * c2 * HW * (C4 + Pw_pad),
        transcendentals=N * c2 * HW,
        bytes_accessed=(N * Ph * C4 * band_w * 2 + c2 * C4 * 2 + c2 * 4
                        + band_w * Pw_pad * 2 + N * Ph * c2 * Pw_pad * 4),
    )

    out = pl.pallas_call(
        focus_kernel,
        out_shape=jax.ShapeDtypeStruct((N, Ph, c2, Pw_pad), jnp.float32),
        grid=(N, n_tiles),
        in_specs=[
            pl.BlockSpec((None, g, C4, band_w), lambda n, t: (n, t, 0, 0)),  # activation bands
            pl.BlockSpec((c2, C4), lambda n, t: (0, 0)),                     # folded conv weight
            pl.BlockSpec((c2, 1), lambda n, t: (0, 0)),                      # folded BN bias
            pl.BlockSpec((band_w, Pw_pad), lambda n, t: (0, 0)),             # per-band pool matrix
        ],
        out_specs=pl.BlockSpec((None, g, c2, Pw_pad), lambda n, t: (n, t, 0, 0)),
        compiler_params=pltpu.CompilerParams(
            dimension_semantics=("parallel", "parallel"),    # batch & band-tiles independent
            vmem_limit_bytes=48 * 1024 * 1024,               # headroom under v7x's 64 MiB
        ),
        cost_estimate=cost,
    )(x_t, w_scaled, bias, pool_m)

    # (N, Ph, c2, Pw_pad) -> drop lane pad, go to NCHW flatten order (tiny array, cheap).
    out = out[:, :, :, :Pw]
    out = jnp.transpose(out, (0, 2, 1, 3)).reshape(N, c2 * Ph * Pw)
    return out


def focus_reference(x, conv_w, gamma, beta, running_mean, running_var,
                    eps=1e-3, pool_k=8):
    """Pure-JAX f32 reference matching the PyTorch forward (BN in inference mode)."""
    N, C, H, W = x.shape
    c2 = conv_w.shape[0]
    x_cat = jnp.concatenate([x[..., ::2, ::2], x[..., 1::2, ::2],
                             x[..., ::2, 1::2], x[..., 1::2, 1::2]], axis=1)
    y = jnp.einsum('nchw,oc->nohw', x_cat, conv_w.reshape(c2, 4 * C))
    y = (y - running_mean[None, :, None, None]) / jnp.sqrt(running_var + eps)[None, :, None, None]
    y = y * gamma[None, :, None, None] + beta[None, :, None, None]
    y = y * jax.nn.sigmoid(y)
    Nn, Cc, Hh, Ww = y.shape
    y = y.reshape(Nn, Cc, Hh // pool_k, pool_k, Ww // pool_k, pool_k).mean(axis=(3, 5))
    return y.reshape(Nn, -1)


if __name__ == "__main__":
    # Small synthetic config: input has 4 channels -> after space-to-depth c1 = 16, c2 = 8.
    N, C, H, W = 2, 4, 16, 16
    c1, c2 = 4 * C, 8

    key = jax.random.PRNGKey(0)
    k_x, k_w, k_g, k_b, k_m, k_v = jax.random.split(key, 6)
    x = jax.random.normal(k_x, (N, C, H, W), jnp.float32)
    conv_w = jax.random.normal(k_w, (c2, c1, 1, 1), jnp.float32) * 0.1     # Conv2d weight (O,I,1,1)
    gamma = jax.random.uniform(k_g, (c2,), jnp.float32, 0.5, 1.5)          # BN weight
    beta = jax.random.normal(k_b, (c2,), jnp.float32) * 0.1                # BN bias
    running_mean = jax.random.normal(k_m, (c2,), jnp.float32) * 0.1        # BN running stats (eval)
    running_var = jax.random.uniform(k_v, (c2,), jnp.float32, 0.5, 1.5)

    focus_jit = jax.jit(focus_forward, static_argnames=("eps", "pool_k"))
    out = focus_jit(x, conv_w, gamma, beta, running_mean, running_var)
    out = jax.block_until_ready(out)

    ref = focus_reference(x, conv_w, gamma, beta, running_mean, running_var)
    assert out.shape == (N, c2 * ((H // 2) // 8) * ((W // 2) // 8)), out.shape
    # bf16 MXU feeding (x + folded weight + pooled y) -> compare vs f32 reference with bf16 tol.
    assert jnp.allclose(out, ref, rtol=2e-2, atol=2e-2), float(jnp.max(jnp.abs(out - ref)))

    print("KERNEL_OK")
</pallas_src>

<mosaic_0001>
module attributes {stable_mosaic.version = 11 : i64} {
  func.func @focus_kernel(%arg0: i32, %arg1: i32, %arg2: memref<1x1x16x64xbf16, #tpu.memory_space<vmem>>, %arg3: memref<8x16xbf16, #tpu.memory_space<vmem>>, %arg4: memref<8x1xf32, #tpu.memory_space<vmem>>, %arg5: memref<64x128xbf16, #tpu.memory_space<vmem>>, %arg6: memref<1x1x8x128xf32, #tpu.memory_space<vmem>>) attributes {dimension_semantics = [#tpu.dimension_semantics<parallel>, #tpu.dimension_semantics<parallel>], iteration_bounds = array<i64: 2, 1>, scalar_prefetch = 0 : i64, scratch_operands = 0 : i64, tpu.core_type = #tpu.core_type<tc>, window_params = [{transform_indices = @transform_0, window_bounds = array<i64: 1, 1, 16, 64>}, {pipeline_mode = #tpu.pipeline_mode<synchronous>, transform_indices = @transform_1, window_bounds = array<i64: 8, 16>}, {pipeline_mode = #tpu.pipeline_mode<synchronous>, transform_indices = @transform_2, window_bounds = array<i64: 8, 1>}, {pipeline_mode = #tpu.pipeline_mode<synchronous>, transform_indices = @transform_3, window_bounds = array<i64: 64, 128>}, {transform_indices = @transform_4, window_bounds = array<i64: 1, 1, 8, 128>}]} {
    %c0 = arith.constant 0 : index
    %c0_0 = arith.constant 0 : index
    %0 = vector.load %arg3[%c0, %c0_0] : memref<8x16xbf16, #tpu.memory_space<vmem>>, vector<8x16xbf16>
    %c0_1 = arith.constant 0 : index
    %c0_2 = arith.constant 0 : index
    %c0_3 = arith.constant 0 : index
    %c0_4 = arith.constant 0 : index
    %1 = vector.load %arg2[%c0_1, %c0_2, %c0_3, %c0_4] : memref<1x1x16x64xbf16, #tpu.memory_space<vmem>>, vector<1x1x16x64xbf16>
    %2 = vector.shape_cast %1 : vector<1x1x16x64xbf16> to vector<16x64xbf16>
    %cst = arith.constant dense<0.000000e+00> : vector<8x64xf32>
    %3 = tpu.matmul %0, %2, %cst {dimension_numbers = #tpu.dot_dimension_numbers<[1], [0], [0], [1], [0, 0, 1, 1], [], []>} : vector<8x16xbf16>, vector<16x64xbf16>, vector<8x64xf32> -> vector<8x64xf32>
    %c0_5 = arith.constant 0 : index
    %c0_6 = arith.constant 0 : index
    %4 = vector.load %arg4[%c0_5, %c0_6] : memref<8x1xf32, #tpu.memory_space<vmem>>, vector<8x1xf32>
    %5 = vector.broadcast %4 : vector<8x1xf32> to vector<8x64xf32>
    %6 = arith.addf %3, %5 : vector<8x64xf32>
    %7 = arith.negf %6 : vector<8x64xf32>
    %8 = math.exp %7 : vector<8x64xf32>
    %cst_7 = arith.constant 1.000000e+00 : f32
    %9 = vector.broadcast %cst_7 : f32 to vector<8x64xf32>
    %10 = arith.addf %9, %8 : vector<8x64xf32>
    %11 = arith.divf %9, %10 : vector<8x64xf32>
    %12 = arith.mulf %6, %11 : vector<8x64xf32>
    %13 = arith.truncf %12 : vector<8x64xf32> to vector<8x64xbf16>
    %c0_8 = arith.constant 0 : index
    %c0_9 = arith.constant 0 : index
    %14 = vector.load %arg5[%c0_8, %c0_9] : memref<64x128xbf16, #tpu.memory_space<vmem>>, vector<64x128xbf16>
    %cst_10 = arith.constant dense<0.000000e+00> : vector<8x128xf32>
    %15 = tpu.matmul %13, %14, %cst_10 {dimension_numbers = #tpu.dot_dimension_numbers<[1], [0], [0], [1], [0, 0, 1, 1], [], []>} : vector<8x64xbf16>, vector<64x128xbf16>, vector<8x128xf32> -> vector<8x128xf32>
    %c0_11 = arith.constant 0 : index
    %c0_12 = arith.constant 0 : index
    %c0_13 = arith.constant 0 : index
    %c0_14 = arith.constant 0 : index
    %16 = vector.load %arg6[%c0_11, %c0_12, %c0_13, %c0_14] : memref<1x1x8x128xf32, #tpu.memory_space<vmem>>, vector<1x1x8x128xf32>
    %17 = vector.shape_cast %16 : vector<1x1x8x128xf32> to vector<8x128xf32>
    %18 = vector.shape_cast %15 : vector<8x128xf32> to vector<1x1x8x128xf32>
    tpu.vector_store %arg6[%c0_11, %c0_12, %c0_13, %c0_14], %18 {strides = array<i32>} : memref<1x1x8x128xf32, #tpu.memory_space<vmem>>, vector<1x1x8x128xf32>,
    return
  }
  func.func @transform_0(%arg0: i32, %arg1: i32) -> (i32, i32, i32, i32) {
    %c0_i32 = arith.constant 0 : i32
    %c0_i32_0 = arith.constant 0 : i32
    %c0_i32_1 = arith.constant 0 : i32
    return %arg0, %arg1, %c0_i32, %c0_i32_0 : i32, i32, i32, i32
  }
  func.func @transform_1(%arg0: i32, %arg1: i32) -> (i32, i32) {
    %c0_i32 = arith.constant 0 : i32
    %c0_i32_0 = arith.constant 0 : i32
    %c0_i32_1 = arith.constant 0 : i32
    return %c0_i32, %c0_i32_0 : i32, i32
  }
  func.func @transform_2(%arg0: i32, %arg1: i32) -> (i32, i32) {
    %c0_i32 = arith.constant 0 : i32
    %c0_i32_0 = arith.constant 0 : i32
    %c0_i32_1 = arith.constant 0 : i32
    return %c0_i32, %c0_i32_0 : i32, i32
  }
  func.func @transform_3(%arg0: i32, %arg1: i32) -> (i32, i32) {
    %c0_i32 = arith.constant 0 : i32
    %c0_i32_0 = arith.constant 0 : i32
    %c0_i32_1 = arith.constant 0 : i32
    return %c0_i32, %c0_i32_0 : i32, i32
  }
  func.func @transform_4(%arg0: i32, %arg1: i32) -> (i32, i32, i32, i32) {
    %c0_i32 = arith.constant 0 : i32
    %c0_i32_0 = arith.constant 0 : i32
    %c0_i32_1 = arith.constant 0 : i32
    return %arg0, %arg1, %c0_i32, %c0_i32_0 : i32, i32, i32, i32
  }
}

</mosaic_0001>

<llo_original>
// kernel: focus_forward.1
$region0: #{focus_forward.1}
  #allocation0 [shape = 'u32[]', space=smem, size = 0x4, offset = 0x4, fixed_abs, tag = 'smem constant byte address 0x4 - core index']
  #allocation1 [shape = 'u32[144,128]{1,0:T(1,128)}', space=vmem, size = 0x12000, scoped, tag = 'internal scratch']
  %s0 = inlined_call_operand.vmem [shape: bf16[2,1,16,64], index: 0, kind: input, shape index: {}]
  %s1 = inlined_call_operand.vmem [shape: bf16[8,16], index: 1, kind: input, shape index: {}]
  %s2 = inlined_call_operand.vmem [shape: f32[8,1], index: 2, kind: input, shape index: {}]
  %s3 = inlined_call_operand.vmem [shape: bf16[64,128], index: 3, kind: input, shape index: {}]
  %s4 = inlined_call_operand.vmem [shape: f32[2,1,8,128], index: 4, kind: output, shape index: {}]
  %s5 = sld [smem:[#allocation0]]
  $region49: #{focus_forward.1} parent=0
    _
  %s7 = ssub.s32 1, %s5
  %s8 = scalar_select 0, %s7, %s5
  loop: start=0, step=1, limit=4
  $region2: #{focus_forward.1} parent=0 // loop_pre_header
    _
  $region3: #{focus_forward.1} parent=0 // loop_header
    %s10 = sphi 0, %s14
    %p11 = scmp.ge.s32.totalorder %s10, 4
    %s17 = sphi 0, %s29
    %s18 = sphi 0, %s25
    %s19 = sphi 0, %s17
    %s20 = sphi 0, %s18
    %s21 = sphi 0, %s19
    %s22 = sphi 0, %s20
    %s34 = sphi 0, %s36
    %s37 = sphi 0, %s34
    %s38 = sphi 0, %s37
    %s54 = sphi 0, %s38
    %s58 = sphi 0, %s58
    %s60 = sphi 0, %s58
    %s61 = sphi 0, %s60
    %s75 = sphi 0, %s61
    %s79 = sphi 0, %s79
    %s81 = sphi 0, %s79
    %s82 = sphi 0, %s81
    %s96 = sphi 0, %s82
    %s100 = sphi 0, %s100
    %s102 = sphi 0, %s100
    %s103 = sphi 0, %s102
    %s117 = sphi 0, %s103
    %s125 = sphi 0, %s127
    %s128 = sphi 0, %s125
    %s129 = sphi 0, %s128
    %s145 = sphi 0, %s129
  $region4: #{focus_forward.1} parent=0 // loop_header_branch
    %13 = sbr.rel (%p11) target = $region8
  $region5: #{focus_forward.1} parent=0 // loop_body
    %s15 = ssub.s32 %s10, 1
    %s16 = ssub.s32 %s10, 2
    %s23 = sadd.s32 1, %s18
    %p24 = scmp.ge.s32.totalorder %s23, 1
    %s25 = scalar_select %p24, 0, %s23
    %s26 = sadd.s32 1, %s17
    %s27 = scalar_select %p24, %s26, %s17
    %p28 = scmp.ge.s32.totalorder %s27, 2
    %s29 = scalar_select %p28, 0, %s27
    %s30 = ssub.s32 %s17, %s29
    %s31 = ssub.s32 %s18, %s25
    %s32 = sor.u32 %s30, %s31
    %p33 = scmp.eq.s32.totalorder %s32, 0
    %s35 = sadd.s32 %s34, 1
    %s36 = scalar_select %p33, %s34, %s35
    %p39 = pneg %p33
    %p40 = scmp.eq.s32.totalorder %s10, 1
    %p41 = por %p39, %p40
    %p42 = scmp.ne.s32.totalorder %s34, %s37
    %p43 = scmp.eq.s32.totalorder %s10, 0
    %p44 = por %p42, %p43
    %p45 = scmp.ne.s32.totalorder %s34, %s37
    %p46 = scmp.eq.s32.totalorder %s15, 1
    %p47 = por %p45, %p46
    %p48 = scmp.ne.s32.totalorder %s37, %s38
    %p49 = scmp.eq.s32.totalorder %s15, 0
    %p50 = por %p48, %p49
    %p51 = scmp.ne.s32.totalorder %s37, %s38
    %p52 = scmp.eq.s32.totalorder %s16, 1
    %p53 = por %p51, %p52
    %p55 = scmp.ne.s32.totalorder %s38, %s54
    %p56 = scmp.eq.s32.totalorder %s16, 0
    %p57 = por %p55, %p56
    %s59 = sadd.s32 %s58, 1
    %p62 = scmp.eq.s32.totalorder %s10, 1
    %p63 = scmp.ne.s32.totalorder %s58, %s60
    %p64 = scmp.eq.s32.totalorder %s10, 0
    %p65 = por %p63, %p64
    %p66 = scmp.ne.s32.totalorder %s58, %s60
    %p67 = scmp.eq.s32.totalorder %s15, 1
    %p68 = por %p66, %p67
    %p69 = scmp.ne.s32.totalorder %s60, %s61
    %p70 = scmp.eq.s32.totalorder %s15, 0
    %p71 = por %p69, %p70
    %p72 = scmp.ne.s32.totalorder %s60, %s61
    %p73 = scmp.eq.s32.totalorder %s16, 1
    %p74 = por %p72, %p73
    %p76 = scmp.ne.s32.totalorder %s61, %s75
    %p77 = scmp.eq.s32.totalorder %s16, 0
    %p78 = por %p76, %p77
    %s80 = sadd.s32 %s79, 1
    %p83 = scmp.eq.s32.totalorder %s10, 1
    %p84 = scmp.ne.s32.totalorder %s79, %s81
    %p85 = scmp.eq.s32.totalorder %s10, 0
    %p86 = por %p84, %p85
    %p87 = scmp.ne.s32.totalorder %s79, %s81
    %p88 = scmp.eq.s32.totalorder %s15, 1
    %p89 = por %p87, %p88
    %p90 = scmp.ne.s32.totalorder %s81, %s82
    %p91 = scmp.eq.s32.totalorder %s15, 0
    %p92 = por %p90, %p91
    %p93 = scmp.ne.s32.totalorder %s81, %s82
    %p94 = scmp.eq.s32.totalorder %s16, 1
    %p95 = por %p93, %p94
    %p97 = scmp.ne.s32.totalorder %s82, %s96
    %p98 = scmp.eq.s32.totalorder %s16, 0
    %p99 = por %p97, %p98
    %s101 = sadd.s32 %s100, 1
    %p104 = scmp.eq.s32.totalorder %s10, 1
    %p105 = scmp.ne.s32.totalorder %s100, %s102
    %p106 = scmp.eq.s32.totalorder %s10, 0
    %p107 = por %p105, %p106
    %p108 = scmp.ne.s32.totalorder %s100, %s102
    %p109 = scmp.eq.s32.totalorder %s15, 1
    %p110 = por %p108, %p109
    %p111 = scmp.ne.s32.totalorder %s102, %s103
    %p112 = scmp.eq.s32.totalorder %s15, 0
    %p113 = por %p111, %p112
    %p114 = scmp.ne.s32.totalorder %s102, %s103
    %p115 = scmp.eq.s32.totalorder %s16, 1
    %p116 = por %p114, %p115
    %p118 = scmp.ne.s32.totalorder %s103, %s117
    %p119 = scmp.eq.s32.totalorder %s16, 0
    %p120 = por %p118, %p119
    %s121 = ssub.s32 %s17, %s29
    %s122 = ssub.s32 %s18, %s25
    %s123 = sor.u32 %s121, %s122
    %p124 = scmp.eq.s32.totalorder %s123, 0
    %s126 = sadd.s32 %s125, 1
    %s127 = scalar_select %p124, %s125, %s126
    %p130 = pneg %p124
    %p131 = scmp.eq.s32.totalorder %s10, 1
    %p132 = por %p130, %p131
    %p133 = scmp.ne.s32.totalorder %s125, %s128
    %p134 = scmp.eq.s32.totalorder %s10, 0
    %p135 = por %p133, %p134
    %p136 = scmp.ne.s32.totalorder %s125, %s128
    %p137 = scmp.eq.s32.totalorder %s15, 1
    %p138 = por %p136, %p137
    %p139 = scmp.ne.s32.totalorder %s128, %s129
    %p140 = scmp.eq.s32.totalorder %s15, 0
    %p141 = por %p139, %p140
    %p142 = scmp.ne.s32.totalorder %s128, %s129
    %p143 = scmp.eq.s32.totalorder %s16, 1
    %p144 = por %p142, %p143
    %p146 = scmp.ne.s32.totalorder %s129, %s145
    %p147 = scmp.eq.s32.totalorder %s16, 0
    %p148 = por %p146, %p147
    %p149 = scmp.le.s32.totalorder 1, %s10
    %p150 = scmp.lt.s32.totalorder %s10, 3
    %p151 = pnand %p149, %p150
    %p152 = pneg %p151
    // Predicated region
    $region9: #{focus_forward.1} parent=5 // pred_check
      _
    $region10: #{focus_forward.1} parent=5 // pred_check_branch
      %154 = sbr.rel (%p151) target = $region12
    $region11: #{focus_forward.1} parent=5 // pred_region
      %s155 = ssub.s32 %s10, 1
      // Predicated region
      $region13: #{focus_forward.1} parent=11 // pred_check
        %p156 = pneg %p71
      $region14: #{focus_forward.1} parent=11 // pred_check_branch
        %158 = sbr.rel (%p156) target = $region16
      $region15: #{focus_forward.1} parent=11 // pred_region
        _
      $region16: #{focus_forward.1} parent=11 // pred_fallthru
        _
      // Predicated region
      $region17: #{focus_forward.1} parent=11 // pred_check
        %p159 = pneg %p92
      $region18: #{focus_forward.1} parent=11 // pred_check_branch
        %161 = sbr.rel (%p159) target = $region20
      $region19: #{focus_forward.1} parent=11 // pred_region
        _
      $region20: #{focus_forward.1} parent=11 // pred_fallthru
        _
      // Predicated region
      $region21: #{focus_forward.1} parent=11 // pred_check
        %p162 = pneg %p113
      $region22: #{focus_forward.1} parent=11 // pred_check_branch
        %164 = sbr.rel (%p162) target = $region24
      $region23: #{focus_forward.1} parent=11 // pred_region
        _
      $region24: #{focus_forward.1} parent=11 // pred_fallthru
        _
    $region12: #{focus_forward.1} parent=5 // pred_fallthru
      _
    %p165 = scmp.lt.s32.totalorder %s10, 2
    // Predicated region
    $region25: #{focus_forward.1} parent=5 // pred_check
      %p166 = pneg %p165
    $region26: #{focus_forward.1} parent=5 // pred_check_branch
      %168 = sbr.rel (%p166) target = $region28
    $region27: #{focus_forward.1} parent=5 // pred_region
      // Predicated region
      $region29: #{focus_forward.1} parent=27 // pred_check
        %p169 = pneg %p44
      $region30: #{focus_forward.1} parent=27 // pred_check_branch
        %171 = sbr.rel (%p169) target = $region32
      $region31: #{focus_forward.1} parent=27 // pred_region
        %p172 = scmp.lt.s32.totalorder %s17, 1
        %s173 = scalar_select %p172, %s17, 1
        %p174 = scmp.lt.s32.totalorder %s18, 0
        %s175 = scalar_select %p174, %s18, 0
        %s176 = smul.addr %s175, 2
        %s177 = smul.addr %s173, 2
        %s178 = sadd.s32 %s176, %s177
        %s179 = smul.addr %s178, 4
        %s180 = scalar_lea.vmem %s0, %s179
      $region32: #{focus_forward.1} parent=27 // pred_fallthru
        _
    $region28: #{focus_forward.1} parent=5 // pred_fallthru
      _
    %p181 = scmp.le.s32.totalorder 1, %s10
    %p182 = scmp.lt.s32.totalorder %s10, 3
    %p183 = pnand %p181, %p182
    %p184 = pneg %p183
    // Predicated region
    $region33: #{focus_forward.1} parent=5 // pred_check
      _
    $region34: #{focus_forward.1} parent=5 // pred_check_branch
      %186 = sbr.rel (%p183) target = $region36
    $region35: #{focus_forward.1} parent=5 // pred_region
      %s187 = ssub.s32 %s10, 1
      %p188 = scmp.lt.s32.totalorder %s19, 1
      %s189 = scalar_select %p188, %s19, 1
      %p190 = scmp.lt.s32.totalorder %s20, 0
      %s191 = scalar_select %p190, %s20, 0
      %s192 = smul.addr %s191, 2
      %s193 = smul.addr %s189, 2
      %s194 = sadd.s32 %s192, %s193
      %s195 = smul.addr %s194, 4
      %s196 = scalar_lea.vmem %s0, %s195
      %p197 = pneg %p50
      %p198 = pneg %p47
      %p199 = pneg %p71
      %p200 = pneg %p68
      %p201 = pneg %p92
      %p202 = pneg %p89
      %p203 = pneg %p113
      %p204 = pneg %p110
      %p205 = pneg %p141
      %p206 = pneg %p138
      %p207 = scmp.lt.s32.totalorder %s19, 1
      %s208 = scalar_select %p207, %s19, 1
      %p209 = scmp.lt.s32.totalorder %s20, 0
      %s210 = scalar_select %p209, %s20, 0
      %s211 = sadd.s32 %s210, %s208
      %s212 = smul.addr %s211, 8
      %s213 = scalar_lea.vmem %s4, %s212
      %p214 = scmp.lt.s32.totalorder %s19, 1
      %s215 = scalar_select %p214, %s19, 1
      %p216 = scmp.lt.s32.totalorder %s20, 0
      %s217 = scalar_select %p216, %s20, 0
      %s218 = smul.addr %s217, 2
      %s219 = smul.addr %s215, 2
      %s220 = sadd.s32 %s218, %s219
      %s221 = smul.addr %s220, 4
      %s222 = scalar_lea.vmem %s0, %s221
      %p223 = scmp.lt.s32.totalorder %s19, 1
      %s224 = scalar_select %p223, %s19, 1
      %p225 = scmp.lt.s32.totalorder %s20, 0
      %s226 = scalar_select %p225, %s20, 0
      %s227 = sadd.s32 %s226, %s224
      %s228 = smul.addr %s227, 8
      %s229 = scalar_lea.vmem %s4, %s228
      %v231 = vld [vmem:[%s1] sm:$0xf]
      %v232 = vld [vmem:[%s222] sm:$0xf]
      %v233 = vld [vmem:[%s222 + $0x4] sm:$0xf]
      %v234 = vld [vmem:[%s2] sm:$0xff]
      %236 = vset.pattern.permute.xlu0 0
      %237 = vperm.xlu0 %236, %v234
      %v238 = vpop.permute.xlu0 %237
      %v242 = vunpack.c.l.b16 %v232
      %v243 = vunpack.c.l.b16 %v233
      %v244 = vpack.c.b16 %v243, %v242
      %vm246 = vcmask 130048
      %v248 = vsel %vm246, %v231, 0
      %250 = vmatprep.subr.bf16.mxu0 0
      %251 = vmatpush1.bf16.msra.mxu0 %v244
      %252 = vmatprep.subr.bf16.mxu0 0
      %253 = vmatpush1.bf16.msra.mxu0 0
      %254 = vmatprep.subr.bf16.mxu0 0
      %255 = vmatpush1.bf16.msra.mxu0 0
      %256 = vmatprep.subr.bf16.mxu0 0
      %257 = vmatpush1.bf16.msra.mxu0 0
      %258 = vmatprep.subr.bf16.mxu0 0
      %259 = vmatpush1.bf16.msra.mxu0 0
      %260 = vmatprep.subr.bf16.mxu0 0
      %261 = vmatpush1.bf16.msra.mxu0 0
      %262 = vmatprep.subr.bf16.mxu0 0
      %263 = vmatpush1.bf16.msra.mxu0 0
      %264 = vmatprep.subr.bf16.mxu0 0
      %265 = vmatpush1.bf16.msra.mxu0 0
      %266 = vmatprep.subr.bf16.mxu0 0
      %267 = vmatpush1.bf16.msra.mxu0 0
      %268 = vmatprep.subr.bf16.mxu0 0
      %269 = vmatpush1.bf16.msra.mxu0 0
      %270 = vmatprep.subr.bf16.mxu0 0
      %271 = vmatpush1.bf16.msra.mxu0 0
      %272 = vmatprep.subr.bf16.mxu0 0
      %273 = vmatpush1.bf16.msra.mxu0 0
      %274 = vmatprep.subr.bf16.mxu0 0
      %275 = vmatpush1.bf16.msra.mxu0 0
      %276 = vmatprep.subr.bf16.mxu0 0
      %277 = vmatpush1.bf16.msra.mxu0 0
      %278 = vmatprep.subr.bf16.mxu0 0
      %279 = vmatpush1.bf16.msra.mxu0 0
      %280 = vmatprep.subr.bf16.mxu0 0
      %281 = vmatpush1.bf16.msra.mxu0 0
      %282 = vmatprep.mubr.bf16.mxu0 0
      %283 = vmatmul.mubr.bf16.gmra.mrb[0].mxu0 %v248
      %v284 = vpop.f32.mrb[0].mxu0
      %v285 = vadd.f32 %v238, %v284
      %v286 = vpop.f32.mrb[0].mxu0
      %v287 = vpop.f32.mrb[0].mxu0
      %v288 = vpop.f32.mrb[0].mxu0
      %289 = vdwg.mxu0
      %v290 = vxor.u32 %v285, 2147483648
      %v291 = vmul.f32 %v290, 1.442695
      %v292 = vpow.pop %v291
      %v293 = vadd.f32 %v292, 1.0
      %v294 = vrcp.pop %v293
      %v295 = vmul.f32 1.0, %v294
      %v296 = vmul.f32 %v285, %v295
      %v297 = vpack.c.bf16 %v296, %v296
      %v298 = vld [vmem:[%s3] sm:$0xf]
      %v299 = vld [vmem:[%s3 + $0x4] sm:$0xf]
      %v300 = vld [vmem:[%s3 + $0x8] sm:$0xf]
      %v301 = vld [vmem:[%s3 + $0xc] sm:$0xf]
      %v302 = vld [vmem:[%s3 + $0x10] sm:$0xf]
      %v303 = vld [vmem:[%s3 + $0x14] sm:$0xf]
      %v304 = vld [vmem:[%s3 + $0x18] sm:$0xf]
      %v305 = vld [vmem:[%s3 + $0x1c] sm:$0xf]
      %v314 = vunpack.c.l.b16 %v298
      %v315 = vunpack.c.l.b16 %v299
      %v316 = vunpack.c.l.b16 %v300
      %v317 = vunpack.c.l.b16 %v301
      %v318 = vunpack.c.l.b16 %v302
      %v319 = vunpack.c.l.b16 %v303
      %v320 = vunpack.c.l.b16 %v304
      %v321 = vunpack.c.l.b16 %v305
      %v322 = vpack.c.b16 %v315, %v314
      %v323 = vpack.c.b16 %v317, %v316
      %v324 = vpack.c.b16 %v319, %v318
      %v325 = vpack.c.b16 %v321, %v320
      %vm330 = vcmask 523264
      %v332 = vsel %vm330, %v297, 0
      %334 = vmatprep.subr.bf16.mxu0 0
      %335 = vmatpush1.bf16.msra.mxu0 %v322
      %336 = vmatprep.subr.bf16.mxu0 0
      %337 = vmatpush1.bf16.msra.mxu0 %v323
      %338 = vmatprep.subr.bf16.mxu0 0
      %339 = vmatpush1.bf16.msra.mxu0 %v324
      %340 = vmatprep.subr.bf16.mxu0 0
      %341 = vmatpush1.bf16.msra.mxu0 %v325
      %342 = vmatprep.subr.bf16.mxu0 0
      %343 = vmatpush1.bf16.msra.mxu0 0
      %344 = vmatprep.subr.bf16.mxu0 0
      %345 = vmatpush1.bf16.msra.mxu0 0
      %346 = vmatprep.subr.bf16.mxu0 0
      %347 = vmatpush1.bf16.msra.mxu0 0
      %348 = vmatprep.subr.bf16.mxu0 0
      %349 = vmatpush1.bf16.msra.mxu0 0
      %350 = vmatprep.subr.bf16.mxu0 0
      %351 = vmatpush1.bf16.msra.mxu0 0
      %352 = vmatprep.subr.bf16.mxu0 0
      %353 = vmatpush1.bf16.msra.mxu0 0
      %354 = vmatprep.subr.bf16.mxu0 0
      %355 = vmatpush1.bf16.msra.mxu0 0
      %356 = vmatprep.subr.bf16.mxu0 0
      %357 = vmatpush1.bf16.msra.mxu0 0
      %358 = vmatprep.subr.bf16.mxu0 0
      %359 = vmatpush1.bf16.msra.mxu0 0
      %360 = vmatprep.subr.bf16.mxu0 0
      %361 = vmatpush1.bf16.msra.mxu0 0
      %362 = vmatprep.subr.bf16.mxu0 0
      %363 = vmatpush1.bf16.msra.mxu0 0
      %364 = vmatprep.subr.bf16.mxu0 0
      %365 = vmatpush1.bf16.msra.mxu0 0
      %366 = vmatprep.mubr.bf16.mxu0 0
      %367 = vmatmul.mubr.bf16.gmra.mrb[0].mxu0 %v332
      %v368 = vpop.f32.mrb[0].mxu0
      %v369 = vadd.f32 0.0, %v368
      %v370 = vpop.f32.mrb[0].mxu0
      %v371 = vpop.f32.mrb[0].mxu0
      %v372 = vpop.f32.mrb[0].mxu0
      %373 = vdwg.mxu0
      %374 = vst [vmem:[%s229] sm:$0xff] %v369
      %p375 = scmp.lt.s32.totalorder %s19, 1
      %s376 = scalar_select %p375, %s19, 1
      %p377 = scmp.lt.s32.totalorder %s20, 0
      %s378 = scalar_select %p377, %s20, 0
      %s379 = sadd.s32 %s378, %s376
      %s380 = smul.addr %s379, 8
      %s381 = scalar_lea.vmem %s4, %s380
      // Predicated region
      $region37: #{focus_forward.1} parent=35 // pred_check
        %p382 = pneg %p138
      $region38: #{focus_forward.1} parent=35 // pred_check_branch
        %384 = sbr.rel (%p382) target = $region40
      $region39: #{focus_forward.1} parent=35 // pred_region
        _
      $region40: #{focus_forward.1} parent=35 // pred_fallthru
        _
    $region36: #{focus_forward.1} parent=5 // pred_fallthru
      _
    %p385 = scmp.le.s32.totalorder 2, %s10
    // Predicated region
    $region41: #{focus_forward.1} parent=5 // pred_check
      %p386 = pneg %p385
    $region42: #{focus_forward.1} parent=5 // pred_check_branch
      %388 = sbr.rel (%p386) target = $region44
    $region43: #{focus_forward.1} parent=5 // pred_region
      %s389 = ssub.s32 %s10, 2
      // Predicated region
      $region45: #{focus_forward.1} parent=43 // pred_check
        %p390 = pneg %p144
      $region46: #{focus_forward.1} parent=43 // pred_check_branch
        %392 = sbr.rel (%p390) target = $region48
      $region47: #{focus_forward.1} parent=43 // pred_region
        %p393 = scmp.lt.s32.totalorder %s21, 1
        %s394 = scalar_select %p393, %s21, 1
        %p395 = scmp.lt.s32.totalorder %s22, 0
        %s396 = scalar_select %p395, %s22, 0
        %s397 = sadd.s32 %s396, %s394
        %s398 = smul.addr %s397, 8
        %s399 = scalar_lea.vmem %s4, %s398
      $region48: #{focus_forward.1} parent=43 // pred_fallthru
        _
    $region44: #{focus_forward.1} parent=5 // pred_fallthru
      _
  $region6: #{focus_forward.1} parent=0 // loop_footer
    %s14 = sadd.s32 1, %s10
  $region7: #{focus_forward.1} parent=0 // loop_footer_branch
    %9 = sbr.rel target = $region3
  $region8: #{focus_forward.1} parent=0 // loop_exit
    _

</llo_original>
